<compile_context>
chip_gen: v7x
topology: tpu7x:2x2x1
jax: 0.10.0
libtpu: 0.0.40
codegen_flags: <defaults>
</compile_context>

<pallas_src>
import jax
import jax.numpy as jnp
from jax.experimental import pallas as pl
from jax.experimental.pallas import tpu as pltpu


# ----------------------------------------------------------------------------
# Pallas kernel 1: per-vocab-tile logits + online log-sum-exp
# ----------------------------------------------------------------------------
def _lastpos_logits_lse_kernel(h_ref, w_ref, b_ref, logits_ref, lse_ref,
                               m_ref, l_ref):
    # h_ref:      (B_pad, D)  f32, already scaled by 1/temperature (resident)
    # w_ref:      (D, TV)     bf16 weight tile (streamed, double-buffered)
    # b_ref:      (1, TV)     f32 bias tile, already scaled by 1/temperature
    # logits_ref: (B_pad, TV) f32 scaled logits for this vocab tile
    # lse_ref:    (B_pad, 1)  f32 log-sum-exp, written on the last grid step
    # m_ref/l_ref: VMEM scratch — running max / rescaled sum of exp
    k = pl.program_id(0)

    @pl.when(k == 0)
    def _():
        m_ref[...] = jnp.full_like(m_ref, -jnp.inf)
        l_ref[...] = jnp.zeros_like(l_ref)

    # HBM traffic is bf16; the dot itself runs in f32 (bit-matches the f32
    # reference; at B_pad=8 rows this op is HBM-bound, not MXU-bound).
    logits = jnp.dot(h_ref[...], w_ref[...].astype(jnp.float32),
                     preferred_element_type=jnp.float32)
    logits = logits + b_ref[...]                    # (B_pad, TV), already /t

    logits_ref[...] = logits                        # lane-dense f32 store

    # Online LSE update across vocab tiles.
    m_prev = m_ref[...]
    m_new = jnp.maximum(m_prev, jnp.max(logits, axis=-1, keepdims=True))
    alpha = jnp.exp(m_prev - m_new)
    l_ref[...] = alpha * l_ref[...] + jnp.sum(jnp.exp(logits - m_new),
                                              axis=-1, keepdims=True)
    m_ref[...] = m_new

    @pl.when(k == pl.num_programs(0) - 1)
    def _():
        lse_ref[...] = m_ref[...] + jnp.log(l_ref[...])


# ----------------------------------------------------------------------------
# Pallas kernel 2: normalization epilogue (log_softmax = logits - lse)
# ----------------------------------------------------------------------------
def _normalize_kernel(logits_ref, lse_ref, probs_ref):
    probs_ref[...] = logits_ref[...] - lse_ref[...]


# ----------------------------------------------------------------------------
# Wrapper: last-step log-probabilities over the vocabulary
# ----------------------------------------------------------------------------
def last_step_log_probs(h_last, w_out, b_out, temperature, *, tv=None):
    """probs = log_softmax((h_last @ w_out + b_out) / temperature) over vocab."""
    B, D = h_last.shape
    D2, V = w_out.shape
    assert D == D2
    assert V % 128 == 0, "vocab must be lane aligned (multiple of 128)"

    w_out = w_out.astype(jnp.bfloat16)              # streamed bf16
    b_out = b_out.reshape(1, V).astype(jnp.float32)

    # Fold temperature into the operands: (h/t) @ W + b/t == (h @ W + b) / t.
    inv_t = jnp.float32(1.0) / jnp.asarray(temperature, jnp.float32)
    h_scaled = h_last.astype(jnp.float32) * inv_t
    b_scaled = b_out * inv_t

    # Pad batch to a full sublane group (unmasked, lane-dense stores).
    B_pad = max(8, ((B + 7) // 8) * 8)
    if B_pad != B:
        h_scaled = jnp.pad(h_scaled, ((0, B_pad - B), (0, 0)))

    # Pick the vocab tile: largest multiple of 128 dividing V whose
    # double-buffered bf16 weight block stays comfortably small.
    if tv is None:
        cap = max(128, (4 * 1024 * 1024) // max(1, D * 2) // 128 * 128)
        tv = 128
        for cand in (4096, 2048, 1024, 512, 256, 128):
            if cand <= cap and V % cand == 0:
                tv = cand
                break
    tv = min(tv, V)
    assert V % tv == 0 and tv % 128 == 0
    n_k = V // tv

    # Explicit scoped-VMEM budget (generation-safe: well under v7x's 64 MiB).
    est_vmem = (2 * D * tv * 2          # double-buffered bf16 weight tiles
                + 2 * tv * 4            # bias tiles
                + B_pad * D * 4         # resident activations
                + 2 * B_pad * tv * 4    # logits output tiles
                + 6 * B_pad * 4)        # lse output + m/l scratch
    vmem_limit = int(min(max(4 * est_vmem, 16 << 20), 48 << 20))

    logits, lse = pl.pallas_call(
        _lastpos_logits_lse_kernel,
        out_shape=(jax.ShapeDtypeStruct((B_pad, V), jnp.float32),
                   jax.ShapeDtypeStruct((B_pad, 1), jnp.float32)),
        grid_spec=pltpu.PrefetchScalarGridSpec(
            num_scalar_prefetch=0,
            grid=(n_k,),
            in_specs=[
                pl.BlockSpec((B_pad, D), lambda k: (0, 0)),   # h (resident)
                pl.BlockSpec((D, tv), lambda k: (0, k)),      # weight tile
                pl.BlockSpec((1, tv), lambda k: (0, k)),      # bias tile
            ],
            out_specs=(
                pl.BlockSpec((B_pad, tv), lambda k: (0, k)),  # scaled logits
                pl.BlockSpec((B_pad, 1), lambda k: (0, 0)),   # lse (last k)
            ),
            scratch_shapes=[pltpu.VMEM((B_pad, 1), jnp.float32),   # running max
                            pltpu.VMEM((B_pad, 1), jnp.float32)],  # running sum
        ),
        compiler_params=pltpu.CompilerParams(
            dimension_semantics=("arbitrary",),   # vocab axis carries the LSE
            vmem_limit_bytes=vmem_limit,
        ),
        cost_estimate=pl.CostEstimate(
            flops=2 * B_pad * D * V,
            transcendentals=B_pad * V,
            bytes_accessed=int(D * V * 2 + V * 4 + 2 * B_pad * V * 4),
        ),
    )(h_scaled, w_out, b_scaled)

    # Cheap (B_pad, V) normalization epilogue, tiled lane-dense along V.
    probs_pad = pl.pallas_call(
        _normalize_kernel,
        out_shape=jax.ShapeDtypeStruct((B_pad, V), jnp.float32),
        grid_spec=pltpu.PrefetchScalarGridSpec(
            num_scalar_prefetch=0,
            grid=(n_k,),
            in_specs=[pl.BlockSpec((B_pad, tv), lambda k: (0, k)),
                      pl.BlockSpec((B_pad, 1), lambda k: (0, 0))],
            out_specs=pl.BlockSpec((B_pad, tv), lambda k: (0, k)),
        ),
        compiler_params=pltpu.CompilerParams(
            dimension_semantics=("parallel",)),
    )(logits, lse)

    return probs_pad[:B]


# ----------------------------------------------------------------------------
# Synthetic "fairseq decoder" + LanguageModelWrapper.forward_decoder semantics
# ----------------------------------------------------------------------------
def make_params(key, vocab, hidden):
    k1, k2, k3, k4, k5 = jax.random.split(key, 5)
    return {
        "embed": jax.random.normal(k1, (vocab, hidden), jnp.float32) * 0.02,
        "w1": jax.random.normal(k2, (hidden, hidden), jnp.float32) * 0.1,
        "b1": jax.random.normal(k3, (hidden,), jnp.float32) * 0.01,
        # Output projection stored (and streamed by the kernel) in bf16.
        "w_out": (jax.random.normal(k4, (hidden, vocab), jnp.float32) * 0.1
                  ).astype(jnp.bfloat16),
        "b_out": jax.random.normal(k5, (1, vocab), jnp.float32) * 0.01,
    }


def forward_decoder(params, tokens, temperature=1.0, *, tv=None):
    """JAX/Pallas equivalent of LanguageModelWrapper.forward_decoder.

    Returns (probs, attn):
      probs: (B, V) log-probabilities for the last decoded position
      attn:  (B, T_src) attention weights for the last decoded position
    """
    # --- synthetic decoder glue (plain JAX), incremental-decoding style:
    #     only the last position's hidden state / attention row is computed.
    emb = params["embed"][tokens]                                # (B, T, D) keys
    d = emb.shape[-1]
    emb_last = emb[:, -1, :]                                     # (B, D)
    h_last = jnp.tanh(emb_last @ params["w1"] + params["b1"])    # (B, D)

    # decoder_out[1]['attn'][:, -1, :] analogue — last query row only.
    attn = jax.nn.softmax(
        jnp.einsum("bd,bsd->bs", h_last, emb) / jnp.sqrt(d), axis=-1)  # (B, T)

    # --- wrapper hot path (fused Pallas kernels): projection + /t + log_softmax
    probs = last_step_log_probs(h_last, params["w_out"], params["b_out"],
                                temperature, tv=tv)              # (B, V)
    return probs, attn


def forward_decoder_ref(params, tokens, temperature=1.0):
    """Pure-JAX reference mirroring the PyTorch semantics exactly."""
    emb = params["embed"][tokens]
    hidden = jnp.tanh(emb @ params["w1"] + params["b1"])
    d = hidden.shape[-1]
    w_out = params["w_out"].astype(jnp.float32)
    b_out = params["b_out"].astype(jnp.float32)
    logits = hidden @ w_out + b_out                              # (B, T, V)
    attn_all = jax.nn.softmax(
        jnp.einsum("btd,bsd->bts", hidden, emb) / jnp.sqrt(d), axis=-1)
    scaled = logits[:, -1:, :] / temperature
    probs = jax.nn.log_softmax(scaled, axis=-1)[:, -1, :]        # (B, V)
    attn = attn_all[:, -1, :]
    return probs, attn


# TODO(synk): forward_encoder / reorder_encoder_out / reorder_incremental_state
# manipulate fairseq model state dicts (no tensor compute) and have no Pallas
# equivalent; only forward_decoder's compute path is implemented.

if __name__ == "__main__":
    B, T, D, V = 2, 8, 32, 256
    key = jax.random.PRNGKey(0)
    kp, kt = jax.random.split(key)
    params = make_params(kp, vocab=V, hidden=D)
    tokens = jax.random.randint(kt, (B, T), 0, V, dtype=jnp.int32)
    temperature = 0.7

    # tv=128 -> 2 vocab tiles, exercising the online LSE across grid steps.
    probs, attn = forward_decoder(params, tokens, temperature, tv=128)
    probs = jax.block_until_ready(probs)
    attn = jax.block_until_ready(attn)

    probs_ref, attn_ref = forward_decoder_ref(params, tokens, temperature)
    assert probs.shape == (B, V) and attn.shape == (B, T)
    assert jnp.allclose(probs, probs_ref, atol=1e-3, rtol=1e-3), (
        float(jnp.max(jnp.abs(probs - probs_ref))))
    assert jnp.allclose(attn, attn_ref, atol=1e-5, rtol=1e-5)
    assert bool(jnp.all(jnp.isfinite(probs)))

    print("KERNEL_OK")
</pallas_src>

<mosaic_0001>
module attributes {stable_mosaic.version = 11 : i64} {
  func.func @_lastpos_logits_lse_kernel(%arg0: i32, %arg1: memref<8x32xf32, #tpu.memory_space<vmem>>, %arg2: memref<32x128xbf16, #tpu.memory_space<vmem>>, %arg3: memref<1x128xf32, #tpu.memory_space<vmem>>, %arg4: memref<8x128xf32, #tpu.memory_space<vmem>>, %arg5: memref<8x1xf32, #tpu.memory_space<vmem>>, %arg6: memref<8x1xf32, #tpu.memory_space<vmem>>, %arg7: memref<8x1xf32, #tpu.memory_space<vmem>>) attributes {dimension_semantics = [#tpu.dimension_semantics<arbitrary>], iteration_bounds = array<i64: 2>, scalar_prefetch = 0 : i64, scratch_operands = 2 : i64, tpu.core_type = #tpu.core_type<tc>, window_params = [{pipeline_mode = #tpu.pipeline_mode<synchronous>, transform_indices = @transform_0, window_bounds = array<i64: 8, 32>}, {transform_indices = @transform_1, window_bounds = array<i64: 32, 128>}, {transform_indices = @transform_2, window_bounds = array<i64: 1, 128>}, {transform_indices = @transform_3, window_bounds = array<i64: 8, 128>}, {pipeline_mode = #tpu.pipeline_mode<synchronous>, transform_indices = @transform_4, window_bounds = array<i64: 8, 1>}]} {
    %c0_i32 = arith.constant 0 : i32
    %0 = arith.cmpi eq, %arg0, %c0_i32 : i32
    %1 = arith.extui %0 : i1 to i32
    %c0_i32_0 = arith.constant 0 : i32
    %2 = arith.cmpi ne, %1, %c0_i32_0 : i32
    scf.if %2 {
      %cst_19 = arith.constant 0xFF800000 : f32
      %30 = vector.broadcast %cst_19 : f32 to vector<8x1xf32>
      %c0_20 = arith.constant 0 : index
      %c0_21 = arith.constant 0 : index
      %31 = vector.load %arg6[%c0_20, %c0_21] : memref<8x1xf32, #tpu.memory_space<vmem>>, vector<8x1xf32>
      tpu.vector_store %arg6[%c0_20, %c0_21], %30 {strides = array<i32>} : memref<8x1xf32, #tpu.memory_space<vmem>>, vector<8x1xf32>,
      %cst_22 = arith.constant 0.000000e+00 : f32
      %32 = vector.broadcast %cst_22 : f32 to vector<8x1xf32>
      %c0_23 = arith.constant 0 : index
      %c0_24 = arith.constant 0 : index
      %33 = vector.load %arg7[%c0_23, %c0_24] : memref<8x1xf32, #tpu.memory_space<vmem>>, vector<8x1xf32>
      tpu.vector_store %arg7[%c0_23, %c0_24], %32 {strides = array<i32>} : memref<8x1xf32, #tpu.memory_space<vmem>>, vector<8x1xf32>,
    } else {
    }
    %c0 = arith.constant 0 : index
    %c0_1 = arith.constant 0 : index
    %3 = vector.load %arg1[%c0, %c0_1] : memref<8x32xf32, #tpu.memory_space<vmem>>, vector<8x32xf32>
    %c0_2 = arith.constant 0 : index
    %c0_3 = arith.constant 0 : index
    %4 = vector.load %arg2[%c0_2, %c0_3] : memref<32x128xbf16, #tpu.memory_space<vmem>>, vector<32x128xbf16>
    %5 = arith.extf %4 : vector<32x128xbf16> to vector<32x128xf32>
    %cst = arith.constant dense<0.000000e+00> : vector<8x128xf32>
    %6 = tpu.matmul %3, %5, %cst {dimension_numbers = #tpu.dot_dimension_numbers<[1], [0], [0], [1], [0, 0, 1, 1], [], []>} : vector<8x32xf32>, vector<32x128xf32>, vector<8x128xf32> -> vector<8x128xf32>
    %c0_4 = arith.constant 0 : index
    %c0_5 = arith.constant 0 : index
    %7 = vector.load %arg3[%c0_4, %c0_5] : memref<1x128xf32, #tpu.memory_space<vmem>>, vector<1x128xf32>
    %8 = vector.broadcast %7 : vector<1x128xf32> to vector<8x128xf32>
    %9 = arith.addf %6, %8 : vector<8x128xf32>
    %c0_6 = arith.constant 0 : index
    %c0_7 = arith.constant 0 : index
    %10 = vector.load %arg4[%c0_6, %c0_7] : memref<8x128xf32, #tpu.memory_space<vmem>>, vector<8x128xf32>
    tpu.vector_store %arg4[%c0_6, %c0_7], %9 {strides = array<i32>} : memref<8x128xf32, #tpu.memory_space<vmem>>, vector<8x128xf32>,
    %c0_8 = arith.constant 0 : index
    %c0_9 = arith.constant 0 : index
    %11 = vector.load %arg6[%c0_8, %c0_9] : memref<8x1xf32, #tpu.memory_space<vmem>>, vector<8x1xf32>
    %cst_10 = arith.constant dense<0xFF800000> : vector<8xf32>
    %12 = vector.multi_reduction <maximumf>, %9, %cst_10 [1] : vector<8x128xf32> to vector<8xf32>
    %13 = vector.shape_cast %12 : vector<8xf32> to vector<8x1xf32>
    %14 = arith.maximumf %11, %13 : vector<8x1xf32>
    %15 = arith.subf %11, %14 : vector<8x1xf32>
    %16 = math.exp %15 : vector<8x1xf32>
    %c0_11 = arith.constant 0 : index
    %c0_12 = arith.constant 0 : index
    %17 = vector.load %arg7[%c0_11, %c0_12] : memref<8x1xf32, #tpu.memory_space<vmem>>, vector<8x1xf32>
    %18 = arith.mulf %16, %17 : vector<8x1xf32>
    %19 = vector.broadcast %14 : vector<8x1xf32> to vector<8x128xf32>
    %20 = arith.subf %9, %19 : vector<8x128xf32>
    %21 = math.exp %20 : vector<8x128xf32>
    %cst_13 = arith.constant dense<0.000000e+00> : vector<8xf32>
    %22 = vector.multi_reduction <add>, %21, %cst_13 [1] : vector<8x128xf32> to vector<8xf32>
    %23 = vector.shape_cast %22 : vector<8xf32> to vector<8x1xf32>
    %24 = arith.addf %18, %23 : vector<8x1xf32>
    %c0_14 = arith.constant 0 : index
    %c0_15 = arith.constant 0 : index
    %25 = vector.load %arg7[%c0_14, %c0_15] : memref<8x1xf32, #tpu.memory_space<vmem>>, vector<8x1xf32>
    tpu.vector_store %arg7[%c0_14, %c0_15], %24 {strides = array<i32>} : memref<8x1xf32, #tpu.memory_space<vmem>>, vector<8x1xf32>,
    %c0_16 = arith.constant 0 : index
    %c0_17 = arith.constant 0 : index
    %26 = vector.load %arg6[%c0_16, %c0_17] : memref<8x1xf32, #tpu.memory_space<vmem>>, vector<8x1xf32>
    tpu.vector_store %arg6[%c0_16, %c0_17], %14 {strides = array<i32>} : memref<8x1xf32, #tpu.memory_space<vmem>>, vector<8x1xf32>,
    %c1_i32 = arith.constant 1 : i32
    %27 = arith.cmpi eq, %arg0, %c1_i32 : i32
    %28 = arith.extui %27 : i1 to i32
    %c0_i32_18 = arith.constant 0 : i32
    %29 = arith.cmpi ne, %28, %c0_i32_18 : i32
    scf.if %29 {
      %c0_19 = arith.constant 0 : index
      %c0_20 = arith.constant 0 : index
      %30 = vector.load %arg6[%c0_19, %c0_20] : memref<8x1xf32, #tpu.memory_space<vmem>>, vector<8x1xf32>
      %c0_21 = arith.constant 0 : index
      %c0_22 = arith.constant 0 : index
      %31 = vector.load %arg7[%c0_21, %c0_22] : memref<8x1xf32, #tpu.memory_space<vmem>>, vector<8x1xf32>
      %32 = math.log %31 : vector<8x1xf32>
      %33 = arith.addf %30, %32 : vector<8x1xf32>
      %c0_23 = arith.constant 0 : index
      %c0_24 = arith.constant 0 : index
      %34 = vector.load %arg5[%c0_23, %c0_24] : memref<8x1xf32, #tpu.memory_space<vmem>>, vector<8x1xf32>
      tpu.vector_store %arg5[%c0_23, %c0_24], %33 {strides = array<i32>} : memref<8x1xf32, #tpu.memory_space<vmem>>, vector<8x1xf32>,
    } else {
    }
    return
  }
  func.func @transform_0(%arg0: i32) -> (i32, i32) {
    %c0_i32 = arith.constant 0 : i32
    %c0_i32_0 = arith.constant 0 : i32
    %c0_i32_1 = arith.constant 0 : i32
    return %c0_i32, %c0_i32_0 : i32, i32
  }
  func.func @transform_1(%arg0: i32) -> (i32, i32) {
    %c0_i32 = arith.constant 0 : i32
    %c0_i32_0 = arith.constant 0 : i32
    return %c0_i32, %arg0 : i32, i32
  }
  func.func @transform_2(%arg0: i32) -> (i32, i32) {
    %c0_i32 = arith.constant 0 : i32
    %c0_i32_0 = arith.constant 0 : i32
    return %c0_i32, %arg0 : i32, i32
  }
  func.func @transform_3(%arg0: i32) -> (i32, i32) {
    %c0_i32 = arith.constant 0 : i32
    %c0_i32_0 = arith.constant 0 : i32
    return %c0_i32, %arg0 : i32, i32
  }
  func.func @transform_4(%arg0: i32) -> (i32, i32) {
    %c0_i32 = arith.constant 0 : i32
    %c0_i32_0 = arith.constant 0 : i32
    %c0_i32_1 = arith.constant 0 : i32
    return %c0_i32, %c0_i32_0 : i32, i32
  }
}

</mosaic_0001>

<llo_original>
// kernel: tpu_custom_call.1
$region0: #{tpu_custom_call.1}
  #allocation0 [shape = 'u32[]', space=smem, size = 0x4, offset = 0x4, fixed_abs, tag = 'smem constant byte address 0x4 - core index']
  #allocation1 [shape = 'u32[144,128]{1,0:T(1,128)}', space=vmem, size = 0x12000, scoped, tag = 'internal scratch']
  #allocation2 [shape = 'f32[8,1]{1,0:T(8,128)}', space=vmem, size = 0x1000, scoped, tag = 'scratch operand']
  #allocation3 [shape = 'f32[8,1]{1,0:T(8,128)}', space=vmem, size = 0x1000, scoped, tag = 'scratch operand']
  %s0 = inlined_call_operand.hbm [shape: f32[8,32], index: 0, kind: input, shape index: {}]
  %s1 = inlined_call_operand.hbm [shape: bf16[32,256], index: 1, kind: input, shape index: {}]
  %s2 = inlined_call_operand.vmem [shape: f32[1,256], index: 2, kind: input, shape index: {}]
  %s3 = inlined_call_operand.hbm [shape: f32[8,256], index: 3, kind: output, shape index: {0}]
  %s4 = inlined_call_operand.vmem [shape: f32[8,1], index: 4, kind: output, shape index: {1}]
  %5 = xla_tuple %s3, %s4
  %s6 = sld [smem:[#allocation0]]
  $region69: #{tpu_custom_call.1} parent=0
    _
  %s8 = ssub.s32 1, %s6
  %s9 = scalar_select 0, %s8, %s6
  $region1: #{tpu_custom_call.1} parent=0
    #allocation4 [shape = 'u8[4096]{0}', space=vmem, size = 0x1000, scoped, tag = 'input window, operand 0, single buffered']
    #allocation5 [shape = 's32[2]{0}', space=sflag, size = 0x8, scoped, tag = 'scoped memory for tpu_custom_call.1']
    #allocation6 [shape = 's32[2]{0}', space=sflag, size = 0x8, scoped, tag = 'scoped memory for tpu_custom_call.1']
    #allocation7 [shape = 'u8[16384]{0}', space=vmem, size = 0x4000, scoped, tag = 'input window, operand 1']
    #allocation8 [shape = 's32[2]{0}', space=sflag, size = 0x8, scoped, tag = 'scoped memory for tpu_custom_call.1']
    #allocation9 [shape = 'u8[8192]{0}', space=vmem, size = 0x2000, scoped, tag = 'output window, operand 0']
    %10 = vsyncpa [#allocation5], 0
    %11 = vsyncpa [#allocation8], 0
    %s12 = scalar_lea.sflag [#allocation8], 1
    %13 = vsyncpa %s12, 0
    %14 = vsyncpa [#allocation6], 0
    %s15 = scalar_lea.sflag [#allocation6], 1
    %16 = vsyncpa %s15, 0
    loop: start=0, step=1, limit=4
    $region2: #{tpu_custom_call.1} parent=1 // loop_pre_header
      _
    $region3: #{tpu_custom_call.1} parent=1 // loop_header
      %s18 = sphi 0, %s22
      %p19 = scmp.ge.s32.totalorder %s18, 4
      %s26 = sphi 0, %s26
      %s28 = sphi 0, %s26
      %s29 = sphi 0, %s28
      %s43 = sphi 0, %s29
      %s49 = sphi 0, %s51
      %s52 = sphi 0, %s49
      %s53 = sphi 0, %s52
      %s69 = sphi 0, %s53
      %s75 = sphi 0, %s77
      %s78 = sphi 0, %s75
      %s79 = sphi 0, %s78
      %s95 = sphi 0, %s79
      %s101 = sphi 0, %s103
      %s104 = sphi 0, %s101
      %s105 = sphi 0, %s104
      %s121 = sphi 0, %s105
      %s125 = sphi 0, %s125
      %s127 = sphi 0, %s125
      %s128 = sphi 0, %s127
      %s142 = sphi 0, %s128
    $region4: #{tpu_custom_call.1} parent=1 // loop_header_branch
      %21 = sbr.rel (%p19) target = $region8
    $region5: #{tpu_custom_call.1} parent=1 // loop_body
      %s23 = ssub.s32 %s18, 1
      %s24 = ssub.s32 %s18, 2
      %s25 = sadd.s32 %s18, 1
      %s27 = sadd.s32 %s26, 1
      %p30 = scmp.eq.s32.totalorder %s18, 1
      %p31 = scmp.ne.s32.totalorder %s26, %s28
      %p32 = scmp.eq.s32.totalorder %s18, 0
      %p33 = por %p31, %p32
      %p34 = scmp.ne.s32.totalorder %s26, %s28
      %p35 = scmp.eq.s32.totalorder %s23, 1
      %p36 = por %p34, %p35
      %p37 = scmp.ne.s32.totalorder %s28, %s29
      %p38 = scmp.eq.s32.totalorder %s23, 0
      %p39 = por %p37, %p38
      %p40 = scmp.ne.s32.totalorder %s28, %s29
      %p41 = scmp.eq.s32.totalorder %s24, 1
      %p42 = por %p40, %p41
      %p44 = scmp.ne.s32.totalorder %s29, %s43
      %p45 = scmp.eq.s32.totalorder %s24, 0
      %p46 = por %p44, %p45
      %s47 = ssub.s32 %s18, %s25
      %p48 = scmp.eq.s32.totalorder %s47, 0
      %s50 = sadd.s32 %s49, 1
      %s51 = scalar_select %p48, %s49, %s50
      %p54 = pneg %p48
      %p55 = scmp.eq.s32.totalorder %s18, 1
      %p56 = por %p54, %p55
      %p57 = scmp.ne.s32.totalorder %s49, %s52
      %p58 = scmp.eq.s32.totalorder %s18, 0
      %p59 = por %p57, %p58
      %p60 = scmp.ne.s32.totalorder %s49, %s52
      %p61 = scmp.eq.s32.totalorder %s23, 1
      %p62 = por %p60, %p61
      %p63 = scmp.ne.s32.totalorder %s52, %s53
      %p64 = scmp.eq.s32.totalorder %s23, 0
      %p65 = por %p63, %p64
      %p66 = scmp.ne.s32.totalorder %s52, %s53
      %p67 = scmp.eq.s32.totalorder %s24, 1
      %p68 = por %p66, %p67
      %p70 = scmp.ne.s32.totalorder %s53, %s69
      %p71 = scmp.eq.s32.totalorder %s24, 0
      %p72 = por %p70, %p71
      %s73 = ssub.s32 %s18, %s25
      %p74 = scmp.eq.s32.totalorder %s73, 0
      %s76 = sadd.s32 %s75, 1
      %s77 = scalar_select %p74, %s75, %s76
      %p80 = pneg %p74
      %p81 = scmp.eq.s32.totalorder %s18, 1
      %p82 = por %p80, %p81
      %p83 = scmp.ne.s32.totalorder %s75, %s78
      %p84 = scmp.eq.s32.totalorder %s18, 0
      %p85 = por %p83, %p84
      %p86 = scmp.ne.s32.totalorder %s75, %s78
      %p87 = scmp.eq.s32.totalorder %s23, 1
      %p88 = por %p86, %p87
      %p89 = scmp.ne.s32.totalorder %s78, %s79
      %p90 = scmp.eq.s32.totalorder %s23, 0
      %p91 = por %p89, %p90
      %p92 = scmp.ne.s32.totalorder %s78, %s79
      %p93 = scmp.eq.s32.totalorder %s24, 1
      %p94 = por %p92, %p93
      %p96 = scmp.ne.s32.totalorder %s79, %s95
      %p97 = scmp.eq.s32.totalorder %s24, 0
      %p98 = por %p96, %p97
      %s99 = ssub.s32 %s18, %s25
      %p100 = scmp.eq.s32.totalorder %s99, 0
      %s102 = sadd.s32 %s101, 1
      %s103 = scalar_select %p100, %s101, %s102
      %p106 = pneg %p100
      %p107 = scmp.eq.s32.totalorder %s18, 1
      %p108 = por %p106, %p107
      %p109 = scmp.ne.s32.totalorder %s101, %s104
      %p110 = scmp.eq.s32.totalorder %s18, 0
      %p111 = por %p109, %p110
      %p112 = scmp.ne.s32.totalorder %s101, %s104
      %p113 = scmp.eq.s32.totalorder %s23, 1
      %p114 = por %p112, %p113
      %p115 = scmp.ne.s32.totalorder %s104, %s105
      %p116 = scmp.eq.s32.totalorder %s23, 0
      %p117 = por %p115, %p116
      %p118 = scmp.ne.s32.totalorder %s104, %s105
      %p119 = scmp.eq.s32.totalorder %s24, 1
      %p120 = por %p118, %p119
      %p122 = scmp.ne.s32.totalorder %s105, %s121
      %p123 = scmp.eq.s32.totalorder %s24, 0
      %p124 = por %p122, %p123
      %s126 = sadd.s32 %s125, 1
      %p129 = scmp.eq.s32.totalorder %s18, 1
      %p130 = scmp.ne.s32.totalorder %s125, %s127
      %p131 = scmp.eq.s32.totalorder %s18, 0
      %p132 = por %p130, %p131
      %p133 = scmp.ne.s32.totalorder %s125, %s127
      %p134 = scmp.eq.s32.totalorder %s23, 1
      %p135 = por %p133, %p134
      %p136 = scmp.ne.s32.totalorder %s127, %s128
      %p137 = scmp.eq.s32.totalorder %s23, 0
      %p138 = por %p136, %p137
      %p139 = scmp.ne.s32.totalorder %s127, %s128
      %p140 = scmp.eq.s32.totalorder %s24, 1
      %p141 = por %p139, %p140
      %p143 = scmp.ne.s32.totalorder %s128, %s142
      %p144 = scmp.eq.s32.totalorder %s24, 0
      %p145 = por %p143, %p144
      %p146 = scmp.le.s32.totalorder 1, %s18
      %p147 = scmp.lt.s32.totalorder %s18, 3
      %p148 = pnand %p146, %p147
      %p149 = pneg %p148
      // Predicated region
      $region9: #{tpu_custom_call.1} parent=5 // pred_check
        _
      $region10: #{tpu_custom_call.1} parent=5 // pred_check_branch
        %151 = sbr.rel (%p148) target = $region12
      $region11: #{tpu_custom_call.1} parent=5 // pred_region
        %s152 = ssub.s32 %s18, 1
        // Predicated region
        $region13: #{tpu_custom_call.1} parent=11 // pred_check
          %p153 = pneg %p39
        $region14: #{tpu_custom_call.1} parent=11 // pred_check_branch
          %155 = sbr.rel (%p153) target = $region16
        $region15: #{tpu_custom_call.1} parent=11 // pred_region
          %s157 = ssub.s32 128, 128
          %158 = vsyncadd [#allocation5], %s157
          %s160 = sshll.u32 [#allocation4], 4
          %s161 = int_to_ptr.vmem [resolvable:$true] %s160
          %163 = dma.hbm_to_vmem [thread:$0]  %s0, 128, %s161, [#allocation5]
        $region16: #{tpu_custom_call.1} parent=11 // pred_fallthru
          _
      $region12: #{tpu_custom_call.1} parent=5 // pred_fallthru
        _
      %p164 = scmp.lt.s32.totalorder %s18, 2
      // Predicated region
      $region17: #{tpu_custom_call.1} parent=5 // pred_check
        %p165 = pneg %p164
      $region18: #{tpu_custom_call.1} parent=5 // pred_check_branch
        %167 = sbr.rel (%p165) target = $region20
      $region19: #{tpu_custom_call.1} parent=5 // pred_region
        // Predicated region
        $region21: #{tpu_custom_call.1} parent=19 // pred_check
          %p168 = pneg %p59
        $region22: #{tpu_custom_call.1} parent=19 // pred_check_branch
          %170 = sbr.rel (%p168) target = $region24
        $region23: #{tpu_custom_call.1} parent=19 // pred_region
          %s171 = sand.u32 %s49, 1
          %s172 = scalar_lea.sflag [#allocation8], %s171
          %s173 = sand.u32 %s49, 1
          %s174 = smul.addr %s173, 16
          %s175 = scalar_lea.vmem [#allocation7], %s174
          %s177 = ssub.s32 256, 256
          %178 = vsyncadd %s172, %s177
          %s179 = smul.addr %s18, 64
          %s180 = scalar_lea.hbm %s1, %s179
          %s181 = sshll.u32 %s175, 4
          %s182 = int_to_ptr.vmem [resolvable:$true] %s181
          %187 = dma.hbm_to_vmem [thread:$0]  %s180, 256, %s182, %s172, 128, 64, 4
        $region24: #{tpu_custom_call.1} parent=19 // pred_fallthru
          _
        // Predicated region
        $region25: #{tpu_custom_call.1} parent=19 // pred_check
          %p188 = pneg %p85
        $region26: #{tpu_custom_call.1} parent=19 // pred_check_branch
          %190 = sbr.rel (%p188) target = $region28
        $region27: #{tpu_custom_call.1} parent=19 // pred_region
          %p191 = scmp.lt.s32.totalorder %s18, 1
          %s192 = scalar_select %p191, %s18, 1
          %s193 = scalar_lea.vmem %s2, %s192
        $region28: #{tpu_custom_call.1} parent=19 // pred_fallthru
          _
      $region20: #{tpu_custom_call.1} parent=5 // pred_fallthru
        _
      %p194 = scmp.le.s32.totalorder 1, %s18
      %p195 = scmp.lt.s32.totalorder %s18, 3
      %p196 = pnand %p194, %p195
      %p197 = pneg %p196
      // Predicated region
      $region29: #{tpu_custom_call.1} parent=5 // pred_check
        _
      $region30: #{tpu_custom_call.1} parent=5 // pred_check_branch
        %199 = sbr.rel (%p196) target = $region32
      $region31: #{tpu_custom_call.1} parent=5 // pred_region
        %s200 = ssub.s32 %s18, 1
        // Predicated region
        $region33: #{tpu_custom_call.1} parent=31 // pred_check
          %p201 = pneg %p39
        $region34: #{tpu_custom_call.1} parent=31 // pred_check_branch
          %203 = sbr.rel (%p201) target = $region36
        $region35: #{tpu_custom_call.1} parent=31 // pred_region
          %204 = dma.done [#allocation5], 128
        $region36: #{tpu_custom_call.1} parent=31 // pred_fallthru
          _
        %s205 = sand.u32 %s52, 1
        %s206 = scalar_lea.sflag [#allocation8], %s205
        %s207 = sand.u32 %s52, 1
        %s208 = smul.addr %s207, 16
        %s209 = scalar_lea.vmem [#allocation7], %s208
        // Predicated region
        $region37: #{tpu_custom_call.1} parent=31 // pred_check
          %p210 = pneg %p65
        $region38: #{tpu_custom_call.1} parent=31 // pred_check_branch
          %212 = sbr.rel (%p210) target = $region40
        $region39: #{tpu_custom_call.1} parent=31 // pred_region
          %213 = dma.done %s206, 256
        $region40: #{tpu_custom_call.1} parent=31 // pred_fallthru
          _
        %p214 = pneg %p39
        %p215 = pneg %p36
        %s216 = sand.u32 %s52, 1
        %s217 = scalar_lea.sflag [#allocation8], %s216
        %s218 = sand.u32 %s52, 1
        %s219 = smul.addr %s218, 16
        %s220 = scalar_lea.vmem [#allocation7], %s219
        %p221 = pneg %p65
        %p222 = pneg %p62
        %p223 = scmp.lt.s32.totalorder %s23, 1
        %s224 = scalar_select %p223, %s23, 1
        %s225 = scalar_lea.vmem %s2, %s224
        %p226 = pneg %p91
        %p227 = pneg %p88
        %p228 = pneg %p117
        %p229 = pneg %p114
        %s230 = sand.u32 %s104, 1
        %s231 = scalar_lea.sflag [#allocation6], %s230
        %s232 = sand.u32 %s104, 1
        %s233 = smul.addr %s232, 8
        %s234 = scalar_lea.vmem [#allocation9], %s233
        %p235 = pneg %p138
        %p236 = pneg %p135
        %p237 = scmp.lt.s32.totalorder %s23, 1
        %s238 = scalar_select %p237, %s23, 1
        %s239 = scalar_lea.vmem %s2, %s238
        %p240 = scmp.eq.s32.totalorder %s23, 0
        // Predicated region
        $region41: #{tpu_custom_call.1} parent=31 // pred_check
          %p241 = pneg %p240
        $region42: #{tpu_custom_call.1} parent=31 // pred_check_branch
          %243 = sbr.rel (%p241) target = $region44
        $region43: #{tpu_custom_call.1} parent=31 // pred_region
          %vm244 = vcmask 7168
          %245 = vst.msk [vmem:[#allocation2] sm:$0xff] %vm244, -inf
          %246 = vst.msk [vmem:[#allocation3] sm:$0xff] %vm244, 0.0
        $region44: #{tpu_custom_call.1} parent=31 // pred_fallthru
          _
        %v247 = vld [vmem:[#allocation4] sm:$0xff]
        %v248 = vld [vmem:[%s209] sm:$0xf]
        %v249 = vld [vmem:[%s209 + $0x4] sm:$0xf]
        %v250 = vld [vmem:[%s209 + $0x8] sm:$0xf]
        %v251 = vld [vmem:[%s209 + $0xc] sm:$0xf]
        %v252 = vunpack.c.l.bf16 %v248
        %v253 = vunpack.c.l.bf16 %v249
        %v254 = vunpack.c.l.bf16 %v250
        %v255 = vunpack.c.l.bf16 %v251
        %v256 = vld [vmem:[%s239] sm:$0x1]
        %v258 = vlaneseq
        %v259 = vshrl.u32 %v258, 7
        %v260 = vsub.s32 0, %v259
        %v261 = vrot.slane %v256, %v260
        %vm263 = vcmask 261120
        %v265 = vsel %vm263, %v247, 0
        %267 = vmatprep.subr.mxu0 0.0
        %268 = vmatpush1.msra.mxu0 %v252
        %269 = vmatprep.subr.mxu0 0.0
        %270 = vmatpush1.msra.mxu0 %v253
        %271 = vmatprep.subr.mxu0 0.0
        %272 = vmatpush1.msra.mxu0 %v254
        %273 = vmatprep.subr.mxu0 0.0
        %274 = vmatpush1.msra.mxu0 %v255
        %275 = vmatprep.subr.mxu0 0.0
        %276 = vmatpush1.msra.mxu0 0.0
        %277 = vmatprep.subr.mxu0 0.0
        %278 = vmatpush1.msra.mxu0 0.0
        %279 = vmatprep.subr.mxu0 0.0
        %280 = vmatpush1.msra.mxu0 0.0
        %281 = vmatprep.subr.mxu0 0.0
        %282 = vmatpush1.msra.mxu0 0.0
        %283 = vmatprep.subr.mxu0 0.0
        %284 = vmatpush1.msra.mxu0 0.0
        %285 = vmatprep.subr.mxu0 0.0
        %286 = vmatpush1.msra.mxu0 0.0
        %287 = vmatprep.subr.mxu0 0.0
        %288 = vmatpush1.msra.mxu0 0.0
        %289 = vmatprep.subr.mxu0 0.0
        %290 = vmatpush1.msra.mxu0 0.0
        %291 = vmatprep.subr.mxu0 0.0
        %292 = vmatpush1.msra.mxu0 0.0
        %293 = vmatprep.subr.mxu0 0.0
        %294 = vmatpush1.msra.mxu0 0.0
        %295 = vmatprep.subr.mxu0 0.0
        %296 = vmatpush1.msra.mxu0 0.0
        %297 = vmatprep.subr.mxu0 0.0
        %298 = vmatpush1.msra.mxu0 0.0
        %299 = vmatprep.subr.mxu0 0.0
        %300 = vmatpush1.msra.mxu0 0.0
        %301 = vmatprep.subr.mxu0 0.0
        %302 = vmatpush1.msra.mxu0 0.0
        %303 = vmatprep.subr.mxu0 0.0
        %304 = vmatpush1.msra.mxu0 0.0
        %305 = vmatprep.subr.mxu0 0.0
        %306 = vmatpush1.msra.mxu0 0.0
        %307 = vmatprep.subr.mxu0 0.0
        %308 = vmatpush1.msra.mxu0 0.0
        %309 = vmatprep.subr.mxu0 0.0
        %310 = vmatpush1.msra.mxu0 0.0
        %311 = vmatprep.subr.mxu0 0.0
        %312 = vmatpush1.msra.mxu0 0.0
        %313 = vmatprep.subr.mxu0 0.0
        %314 = vmatpush1.msra.mxu0 0.0
        %315 = vmatprep.subr.mxu0 0.0
        %316 = vmatpush1.msra.mxu0 0.0
        %317 = vmatprep.subr.mxu0 0.0
        %318 = vmatpush1.msra.mxu0 0.0
        %319 = vmatprep.subr.mxu0 0.0
        %320 = vmatpush1.msra.mxu0 0.0
        %321 = vmatprep.subr.mxu0 0.0
        %322 = vmatpush1.msra.mxu0 0.0
        %323 = vmatprep.subr.mxu0 0.0
        %324 = vmatpush1.msra.mxu0 0.0
        %325 = vmatprep.subr.mxu0 0.0
        %326 = vmatpush1.msra.mxu0 0.0
        %327 = vmatprep.subr.mxu0 0.0
        %328 = vmatpush1.msra.mxu0 0.0
        %329 = vmatprep.subr.mxu0 0.0
        %330 = vmatpush1.msra.mxu0 0.0
        %331 = vmatprep.mubr.f32.mxu0 0.0
        %332 = vmatmul.mubr.f32.gmra.mrb[0].mxu0 %v265
        %v333 = vpop.f32.mrb[0].mxu0
        %v334 = vadd.f32 %v261, %v333
        %v335 = vpop.f32.mrb[0].mxu0
        %336 = vdwg.mxu0
        %337 = vst [vmem:[%s234] sm:$0xff] %v334
        %v338 = vld [vmem:[#allocation2] sm:$0xff]
        %339 = vmax.xlane.f32.xlu0 %v334
        %v340 = vpop.xlane.xlu0 %339
        %v341 = vmax.f32 %v338, %v340
        %v342 = vsub.f32 %v338, %v341
        %v343 = vmul.f32 %v342, 1.442695
        %v344 = vpow.pop %v343
        %v345 = vld [vmem:[#allocation3] sm:$0xff]
        %v346 = vmul.f32 %v344, %v345
        %348 = vset.pattern.permute.xlu0 0
        %349 = vperm.xlu0 %348, %v341
        %v350 = vpop.permute.xlu0 %349
        %v352 = vsub.f32 %v334, %v350
        %v353 = vmul.f32 %v352, 1.442695
        %v354 = vpow.pop %v353
        %355 = vadd.xlane.f32.xlu0 %v354
        %v356 = vpop.xlane.xlu0 %355
        %v357 = vadd.f32 %v346, %v356
        %vm358 = vcmask 7168
        %359 = vst.msk [vmem:[#allocation3] sm:$0xff] %vm358, %v357
        %360 = vst.msk [vmem:[#allocation2] sm:$0xff] %vm358, %v341
        %p361 = scmp.eq.s32.totalorder %s23, 1
        // Predicated region
        $region45: #{tpu_custom_call.1} parent=31 // pred_check
          %p362 = pneg %p361
        $region46: #{tpu_custom_call.1} parent=31 // pred_check_branch
          %364 = sbr.rel (%p362) target = $region48
        $region47: #{tpu_custom_call.1} parent=31 // pred_region
          %v365 = vld [vmem:[#allocation2] sm:$0xff]
          %v366 = vld [vmem:[#allocation3] sm:$0xff]
          %v367 = vlog2.pop %v366
          %v368 = vmul.f32 %v367, 0.6931472
          %v369 = vadd.f32 %v365, %v368
          %370 = vst.msk [vmem:[%s4] sm:$0xff] %vm358, %v369
        $region48: #{tpu_custom_call.1} parent=31 // pred_fallthru
          _
        %s371 = sand.u32 %s104, 1
        %s372 = scalar_lea.sflag [#allocation6], %s371
        %s373 = sand.u32 %s104, 1
        %s374 = smul.addr %s373, 8
        %s375 = scalar_lea.vmem [#allocation9], %s374
        // Predicated region
        $region49: #{tpu_custom_call.1} parent=31 // pred_check
          %p376 = pneg %p114
        $region50: #{tpu_custom_call.1} parent=31 // pred_check_branch
          %378 = sbr.rel (%p376) target = $region52
        $region51: #{tpu_custom_call.1} parent=31 // pred_region
          %s380 = ssub.s32 128, 128
          %381 = vsyncadd %s372, %s380
          %s382 = smul.addr %s23, 128
          %s383 = scalar_lea.hbm %s3, %s382
          %s385 = sshll.u32 %s375, 4
          %s386 = int_to_ptr.vmem [resolvable:$true] %s385
          %388 = dma.vmem_to_hbm [thread:$0]  %s386, 128, %s383, %s372
        $region52: #{tpu_custom_call.1} parent=31 // pred_fallthru
          _
        // Predicated region
        $region53: #{tpu_custom_call.1} parent=31 // pred_check
          %p389 = pneg %p135
        $region54: #{tpu_custom_call.1} parent=31 // pred_check_branch
          %391 = sbr.rel (%p389) target = $region56
        $region55: #{tpu_custom_call.1} parent=31 // pred_region
          _
        $region56: #{tpu_custom_call.1} parent=31 // pred_fallthru
          _
        // Predicated region
        $region57: #{tpu_custom_call.1} parent=31 // pred_check
          %p392 = pneg %p135
        $region58: #{tpu_custom_call.1} parent=31 // pred_check_branch
          %394 = sbr.rel (%p392) target = $region60
        $region59: #{tpu_custom_call.1} parent=31 // pred_region
          _
        $region60: #{tpu_custom_call.1} parent=31 // pred_fallthru
          _
      $region32: #{tpu_custom_call.1} parent=5 // pred_fallthru
        _
      %p395 = scmp.le.s32.totalorder 2, %s18
      // Predicated region
      $region61: #{tpu_custom_call.1} parent=5 // pred_check
        %p396 = pneg %p395
      $region62: #{tpu_custom_call.1} parent=5 // pred_check_branch
        %398 = sbr.rel (%p396) target = $region64
      $region63: #{tpu_custom_call.1} parent=5 // pred_region
        %s399 = ssub.s32 %s18, 2
        // Predicated region
        $region65: #{tpu_custom_call.1} parent=63 // pred_check
          %p400 = pneg %p120
        $region66: #{tpu_custom_call.1} parent=63 // pred_check_branch
          %402 = sbr.rel (%p400) target = $region68
        $region67: #{tpu_custom_call.1} parent=63 // pred_region
          %s403 = sand.u32 %s105, 1
          %s404 = scalar_lea.sflag [#allocation6], %s403
          %s405 = sand.u32 %s105, 1
          %s406 = smul.addr %s405, 8
          %s407 = scalar_lea.vmem [#allocation9], %s406
          %408 = dma.done %s404, 128
        $region68: #{tpu_custom_call.1} parent=63 // pred_fallthru
          _
      $region64: #{tpu_custom_call.1} parent=5 // pred_fallthru
        _
    $region6: #{tpu_custom_call.1} parent=1 // loop_footer
      %s22 = sadd.s32 1, %s18
    $region7: #{tpu_custom_call.1} parent=1 // loop_footer_branch
      %17 = sbr.rel target = $region3
    $region8: #{tpu_custom_call.1} parent=1 // loop_exit
      _
    %409 = vsyncpa [#allocation5], 1
    %s410 = scalar_lea.sflag [#allocation5], 1
    %411 = vsyncpa %s410, 1
    %412 = vsyncpa [#allocation8], 1
    %s413 = scalar_lea.sflag [#allocation8], 1
    %414 = vsyncpa %s413, 1
    %415 = vsyncpa [#allocation6], 1
    %s416 = scalar_lea.sflag [#allocation6], 1
    %417 = vsyncpa %s416, 1

</llo_original>
